<compile_context>
chip_gen: v6e
topology: v6e:2x2x1
jax: 0.10.0
libtpu: 0.0.40
codegen_flags: <defaults>
</compile_context>

<pallas_src>
import functools
import math

import jax
import jax.numpy as jnp
from jax.experimental import pallas as pl
from jax.experimental.pallas import tpu as pltpu


def _round_up(x, m):
    return (x + m - 1) // m * m


def _pick_tile(size, cap, min_blocks=1):
    """Largest multiple of 128 that divides `size` (itself a multiple of 128),
    is <= cap, and leaves at least `min_blocks` grid blocks."""
    best = 128
    c = 128
    limit = min(cap, size)
    while c <= limit:
        if size % c == 0 and size // c >= min_blocks:
            best = c
        c += 128
    return best


def _pick_tm(m, cap=512, floor=256, align=8):
    """Pick tm (multiple of `align`) minimizing round-up waste of M, preferring
    larger tiles on ties."""
    hi = min(cap, _round_up(m, align))
    lo = min(floor, hi)
    best_tm, best_mp = hi, _round_up(m, hi)
    tm = lo
    while tm <= hi:
        mp = _round_up(m, tm)
        if mp < best_mp or (mp == best_mp and tm > best_tm):
            best_tm, best_mp = tm, mp
        tm += align
    return best_tm


def _linear_kernel(x_ref, w_ref, b_ref, o_ref, acc_ref, *, compute_dtype):
    # x_ref: (tm, tk) input dtype    w_ref: (tk, tn) compute_dtype (K, N layout)
    # b_ref: (1, tn) f32             o_ref: (tm, tn)   acc_ref: (tm, tn) f32
    k = pl.program_id(2)

    @pl.when(k == 0)
    def _init():
        acc_ref[...] = jnp.zeros_like(acc_ref)

    # bf16 operands, f32 accumulation, MXU-native (M,K)x(K,N) contraction.
    acc_ref[...] += jnp.dot(
        x_ref[...].astype(compute_dtype),
        w_ref[...],
        preferred_element_type=jnp.float32,
    )

    @pl.when(k == pl.num_programs(2) - 1)
    def _finalize():
        o_ref[...] = (acc_ref[...] + b_ref[...]).astype(o_ref.dtype)


def prepare_linear_params(weight, bias, *, compute_dtype=jnp.bfloat16):
    """One-time (init) conversion of torch-layout params to kernel layout.

    weight: (out_features, in_features) -> (Kp, Np) `compute_dtype`, transposed
            to the MXU-native (K, N) layout and padded to multiples of 128 so
            the per-call hot path never pads or transposes the weight.
    bias:   (out_features,) -> (1, Np) float32.
    Returns (w_kn, bias2d, out_features).
    """
    n_out, k_in = weight.shape
    kp, np_ = _round_up(k_in, 128), _round_up(n_out, 128)
    w_kn = weight.T.astype(compute_dtype)
    if (kp, np_) != (k_in, n_out):
        w_kn = jnp.pad(w_kn, ((0, kp - k_in), (0, np_ - n_out)))
    b2d = bias.astype(jnp.float32).reshape(1, n_out)
    if np_ != n_out:
        b2d = jnp.pad(b2d, ((0, 0), (0, np_ - n_out)))
    return w_kn, b2d, n_out


@functools.partial(
    jax.jit,
    static_argnames=("n_out", "tm_cap", "tn_cap", "tk_cap", "compute_dtype",
                     "prefer_pallas"),
)
def linear_forward(x, w_kn, b2d, *, n_out, tm_cap=512, tn_cap=512, tk_cap=2048,
                   compute_dtype=jnp.bfloat16, prefer_pallas=None):
    """y = x @ W.T + b over the last axis of x.

    x:    (..., in_features)
    w_kn: (Kp, Np)  weight prepared by `prepare_linear_params`
    b2d:  (1, Np)   bias prepared by `prepare_linear_params`
    """
    *lead, k_in = x.shape
    kp, np_ = w_kn.shape
    m = math.prod(lead) if lead else 1

    # Small-problem fast path: pallas_call fixed cost + pad/slice HBM traffic
    # dominates for BiDAF-sized layers; let XLA handle those.
    small = m * np_ * kp < (1 << 22)
    use_pallas = (not small) if prefer_pallas is None else prefer_pallas
    if not use_pallas:
        y2d = jnp.dot(
            x.reshape(m, k_in).astype(compute_dtype),
            w_kn[:k_in, :n_out],
            preferred_element_type=jnp.float32,
        ) + b2d[:, :n_out]
        return y2d.astype(x.dtype).reshape(*lead, n_out)

    # --- Tile selection (all static at trace time) -------------------------
    tk = _pick_tile(kp, tk_cap)            # exact divisor of Kp
    tn = _pick_tile(np_, tn_cap)           # exact divisor of Np
    tm = _pick_tm(m, cap=tm_cap)           # multiple of 8, minimal M waste
    mp = _round_up(m, tm)
    grid_m, grid_n, grid_k = mp // tm, np_ // tn, kp // tk

    # v7x has 2 TensorCores: make sure at least two blocks exist along a
    # "parallel" axis so both cores get work (harmless on v5e/v6e).
    if grid_m == 1 and grid_n == 1 and np_ // 128 >= 2:
        tn = _pick_tile(np_, tn_cap, min_blocks=2)
        grid_n = np_ // tn

    # --- Pad x (M edge is discarded later; K edge MUST be zeros) -----------
    x2d = x.reshape(m, k_in)
    if (mp, kp) != (m, k_in):
        x2d = jnp.pad(x2d, ((0, mp - m), (0, kp - k_in)))

    cost = pl.CostEstimate(
        flops=2 * mp * np_ * kp,
        transcendentals=0,
        bytes_accessed=(
            x2d.size * x2d.dtype.itemsize * grid_n       # x re-read per j block
            + w_kn.size * w_kn.dtype.itemsize * grid_m   # W re-read per i block
            + b2d.size * 4
            + mp * np_ * x.dtype.itemsize                # output writeback
        ),
    )

    kernel = functools.partial(_linear_kernel, compute_dtype=compute_dtype)

    out2d = pl.pallas_call(
        kernel,
        out_shape=jax.ShapeDtypeStruct((mp, np_), x.dtype),
        grid_spec=pltpu.PrefetchScalarGridSpec(
            num_scalar_prefetch=0,
            grid=(grid_m, grid_n, grid_k),
            in_specs=[
                pl.BlockSpec((tm, tk), lambda i, j, k: (i, k)),   # x tile
                pl.BlockSpec((tk, tn), lambda i, j, k: (k, j)),   # W (K, N) tile
                pl.BlockSpec((1, tn), lambda i, j, k: (0, j)),    # bias tile
            ],
            out_specs=pl.BlockSpec((tm, tn), lambda i, j, k: (i, j)),
            scratch_shapes=[pltpu.VMEM((tm, tn), jnp.float32)],
        ),
        compiler_params=pltpu.CompilerParams(
            dimension_semantics=("parallel", "parallel", "arbitrary"),
            vmem_limit_bytes=48 * 1024 * 1024,
        ),
        cost_estimate=cost,
    )(x2d, w_kn, b2d)

    return out2d[:m, :n_out].reshape(*lead, n_out)


def init_linear_params(key, in_features, out_features, dtype=jnp.float32):
    # reset_params(): kaiming_normal_(weight) (fan_in, leaky_relu a=0)
    #   => std = sqrt(2 / in_features); bias = 0.
    std = (2.0 / in_features) ** 0.5
    weight = std * jax.random.normal(key, (out_features, in_features), dtype=dtype)
    bias = jnp.zeros((out_features,), dtype=dtype)
    return weight, bias


if __name__ == "__main__":
    key = jax.random.PRNGKey(0)
    kx, kw, kx2, kw2, kx3, kw3 = jax.random.split(key, 6)

    # 1) Small BiDAF-like shape, forced through the Pallas path.
    batch, seq, in_features, out_features = 2, 8, 32, 64
    x = jax.random.normal(kx, (batch, seq, in_features), dtype=jnp.float32)
    weight, bias = init_linear_params(kw, in_features, out_features)
    w_kn, b2d, n_out = prepare_linear_params(weight, bias)

    y = jax.block_until_ready(
        linear_forward(x, w_kn, b2d, n_out=n_out, prefer_pallas=True))
    y_ref = jnp.einsum("bsk,nk->bsn", x, weight, precision="highest") + bias
    assert y.shape == (batch, seq, out_features)
    assert jnp.allclose(y, y_ref, atol=2e-2, rtol=2e-2)

    # Also exercise the small-problem XLA fast path (auto dispatch).
    y_fast = jax.block_until_ready(linear_forward(x, w_kn, b2d, n_out=n_out))
    assert jnp.allclose(y_fast, y_ref, atol=2e-2, rtol=2e-2)

    # 2) Non-aligned shape: exercises M/K/N padding, divisor tiles, and the
    #    "force >=2 j-blocks" megacore heuristic (grid -> (1, 3, 1)).
    b2, s2, k2, n2 = 4, 100, 200, 300
    x2 = jax.random.normal(kx2, (b2, s2, k2), dtype=jnp.float32)
    w2, bi2 = init_linear_params(kw2, k2, n2)
    w_kn2, b2d2, n_out2 = prepare_linear_params(w2, bi2)
    y2 = jax.block_until_ready(linear_forward(x2, w_kn2, b2d2, n_out=n_out2))
    y2_ref = jnp.einsum("bsk,nk->bsn", x2, w2, precision="highest") + bi2
    assert y2.shape == (b2, s2, n2)
    assert jnp.allclose(y2, y2_ref, atol=5e-2, rtol=5e-2)

    # 3) Larger aligned shape: multi-block (8, 2, 1) grid with 512x512 tiles,
    #    tk = 1024, bf16 MXU path.
    b3, s3, k3, n3 = 8, 512, 1024, 1024
    x3 = jax.random.normal(kx3, (b3, s3, k3), dtype=jnp.float32)
    w3, bi3 = init_linear_params(kw3, k3, n3)
    w_kn3, b2d3, n_out3 = prepare_linear_params(w3, bi3)
    y3 = jax.block_until_ready(linear_forward(x3, w_kn3, b2d3, n_out=n_out3))
    y3_ref = jnp.einsum("bsk,nk->bsn", x3, w3, precision="highest") + bi3
    assert y3.shape == (b3, s3, n3)
    assert jnp.allclose(y3, y3_ref, atol=5e-2, rtol=2e-2)

    print("KERNEL_OK")
</pallas_src>

<mosaic_0001>
module attributes {stable_mosaic.version = 11 : i64} {
  func.func @_linear_kernel(%arg0: i32, %arg1: i32, %arg2: i32, %arg3: memref<16x128xf32, #tpu.memory_space<vmem>>, %arg4: memref<128x128xbf16, #tpu.memory_space<vmem>>, %arg5: memref<1x128xf32, #tpu.memory_space<vmem>>, %arg6: memref<16x128xf32, #tpu.memory_space<vmem>>, %arg7: memref<16x128xf32, #tpu.memory_space<vmem>>) attributes {dimension_semantics = [#tpu.dimension_semantics<parallel>, #tpu.dimension_semantics<parallel>, #tpu.dimension_semantics<arbitrary>], iteration_bounds = array<i64: 1, 1, 1>, scalar_prefetch = 0 : i64, scratch_operands = 1 : i64, tpu.core_type = #tpu.core_type<tc>, window_params = [{transform_indices = @transform_0, window_bounds = array<i64: 16, 128>}, {transform_indices = @transform_1, window_bounds = array<i64: 128, 128>}, {transform_indices = @transform_2, window_bounds = array<i64: 1, 128>}, {transform_indices = @transform_3, window_bounds = array<i64: 16, 128>}]} {
    %c0_i32 = arith.constant 0 : i32
    %0 = arith.cmpi eq, %arg2, %c0_i32 : i32
    %1 = arith.extui %0 : i1 to i32
    %c0_i32_0 = arith.constant 0 : i32
    %2 = arith.cmpi ne, %1, %c0_i32_0 : i32
    scf.if %2 {
      %cst_10 = arith.constant 0.000000e+00 : f32
      %13 = vector.broadcast %cst_10 : f32 to vector<16x128xf32>
      %c0_11 = arith.constant 0 : index
      %c0_12 = arith.constant 0 : index
      %14 = vector.load %arg7[%c0_11, %c0_12] : memref<16x128xf32, #tpu.memory_space<vmem>>, vector<16x128xf32>
      tpu.vector_store %arg7[%c0_11, %c0_12], %13 {strides = array<i32>} : memref<16x128xf32, #tpu.memory_space<vmem>>, vector<16x128xf32>,
    } else {
    }
    %c0 = arith.constant 0 : index
    %c0_1 = arith.constant 0 : index
    %3 = vector.load %arg7[%c0, %c0_1] : memref<16x128xf32, #tpu.memory_space<vmem>>, vector<16x128xf32>
    %c0_2 = arith.constant 0 : index
    %c0_3 = arith.constant 0 : index
    %4 = vector.load %arg3[%c0_2, %c0_3] : memref<16x128xf32, #tpu.memory_space<vmem>>, vector<16x128xf32>
    %5 = arith.truncf %4 : vector<16x128xf32> to vector<16x128xbf16>
    %c0_4 = arith.constant 0 : index
    %c0_5 = arith.constant 0 : index
    %6 = vector.load %arg4[%c0_4, %c0_5] : memref<128x128xbf16, #tpu.memory_space<vmem>>, vector<128x128xbf16>
    %cst = arith.constant dense<0.000000e+00> : vector<16x128xf32>
    %7 = tpu.matmul %5, %6, %cst {dimension_numbers = #tpu.dot_dimension_numbers<[1], [0], [0], [1], [0, 0, 1, 1], [], []>} : vector<16x128xbf16>, vector<128x128xbf16>, vector<16x128xf32> -> vector<16x128xf32>
    %8 = arith.addf %3, %7 : vector<16x128xf32>
    %c0_6 = arith.constant 0 : index
    %c0_7 = arith.constant 0 : index
    %9 = vector.load %arg7[%c0_6, %c0_7] : memref<16x128xf32, #tpu.memory_space<vmem>>, vector<16x128xf32>
    tpu.vector_store %arg7[%c0_6, %c0_7], %8 {strides = array<i32>} : memref<16x128xf32, #tpu.memory_space<vmem>>, vector<16x128xf32>,
    %c0_i32_8 = arith.constant 0 : i32
    %10 = arith.cmpi eq, %arg2, %c0_i32_8 : i32
    %11 = arith.extui %10 : i1 to i32
    %c0_i32_9 = arith.constant 0 : i32
    %12 = arith.cmpi ne, %11, %c0_i32_9 : i32
    scf.if %12 {
      %c0_10 = arith.constant 0 : index
      %c0_11 = arith.constant 0 : index
      %13 = vector.load %arg7[%c0_10, %c0_11] : memref<16x128xf32, #tpu.memory_space<vmem>>, vector<16x128xf32>
      %c0_12 = arith.constant 0 : index
      %c0_13 = arith.constant 0 : index
      %14 = vector.load %arg5[%c0_12, %c0_13] : memref<1x128xf32, #tpu.memory_space<vmem>>, vector<1x128xf32>
      %15 = vector.broadcast %14 : vector<1x128xf32> to vector<16x128xf32>
      %16 = arith.addf %13, %15 : vector<16x128xf32>
      %c0_14 = arith.constant 0 : index
      %c0_15 = arith.constant 0 : index
      %17 = vector.load %arg6[%c0_14, %c0_15] : memref<16x128xf32, #tpu.memory_space<vmem>>, vector<16x128xf32>
      tpu.vector_store %arg6[%c0_14, %c0_15], %16 {strides = array<i32>} : memref<16x128xf32, #tpu.memory_space<vmem>>, vector<16x128xf32>,
    } else {
    }
    return
  }
  func.func @transform_0(%arg0: i32, %arg1: i32, %arg2: i32) -> (i32, i32) {
    %c0_i32 = arith.constant 0 : i32
    return %arg0, %arg2 : i32, i32
  }
  func.func @transform_1(%arg0: i32, %arg1: i32, %arg2: i32) -> (i32, i32) {
    %c0_i32 = arith.constant 0 : i32
    return %arg2, %arg1 : i32, i32
  }
  func.func @transform_2(%arg0: i32, %arg1: i32, %arg2: i32) -> (i32, i32) {
    %c0_i32 = arith.constant 0 : i32
    %c0_i32_0 = arith.constant 0 : i32
    return %c0_i32, %arg1 : i32, i32
  }
  func.func @transform_3(%arg0: i32, %arg1: i32, %arg2: i32) -> (i32, i32) {
    %c0_i32 = arith.constant 0 : i32
    return %arg0, %arg1 : i32, i32
  }
}

</mosaic_0001>

<llo_original>
// kernel: linear_forward.1
$region0: #{linear_forward.1}
  #allocation0 [shape = 'u32[]', space=smem, size = 0x4, offset = 0x4, fixed_abs, tag = 'smem constant byte address 0x4 - core index']
  #allocation1 [shape = 'u32[144,128]{1,0:T(1,128)}', space=vmem, size = 0x12000, scoped, tag = 'internal scratch']
  #allocation2 [shape = 'f32[16,128]{1,0:T(8,128)}', space=vmem, size = 0x2000, scoped, tag = 'scratch operand']
  %s0 = inlined_call_operand.vmem [shape: f32[16,128], index: 0, kind: input, shape index: {}]
  %s1 = inlined_call_operand.hbm [shape: bf16[128,128], index: 1, kind: input, shape index: {}]
  %s2 = inlined_call_operand.vmem [shape: f32[1,128], index: 2, kind: input, shape index: {}]
  %s3 = inlined_call_operand.vmem [shape: f32[16,128], index: 3, kind: output, shape index: {}]
  %s4 = sld [smem:[#allocation0]]
  $region34: #{linear_forward.1} parent=0
    _
  %s6 = ssub.s32 1, %s4
  %s7 = scalar_select 0, %s6, %s4
  $region1: #{linear_forward.1} parent=0
    #allocation3 [shape = 'u8[32768]{0}', space=vmem, size = 0x8000, scoped, tag = 'input window, operand 1, single buffered']
    #allocation4 [shape = 's32[1]{0}', space=sflag, size = 0x4, scoped, tag = 'scoped memory for linear_forward.1']
    %8 = vsyncpa [#allocation4], 0
    // Predicated region
    $region2: #{linear_forward.1} parent=1 // pred_check
      _
    $region3: #{linear_forward.1} parent=1 // pred_check_branch
      %10 = sbr.rel (0) target = $region5
    $region4: #{linear_forward.1} parent=1 // pred_region
      _
    $region5: #{linear_forward.1} parent=1 // pred_fallthru
      _
    // Predicated region
    $region6: #{linear_forward.1} parent=1 // pred_check
      _
    $region7: #{linear_forward.1} parent=1 // pred_check_branch
      %12 = sbr.rel (0) target = $region9
    $region8: #{linear_forward.1} parent=1 // pred_region
      %s14 = ssub.s32 1024, 1024
      %15 = vsyncadd [#allocation4], %s14
      %s16 = sshll.u32 [#allocation3], 4
      %s17 = int_to_ptr.vmem [resolvable:$true] %s16
      %22 = dma.hbm_to_vmem [thread:$0]  %s1, 1024, %s17, [#allocation4], 64, 64, 4
    $region9: #{linear_forward.1} parent=1 // pred_fallthru
      _
    // Predicated region
    $region10: #{linear_forward.1} parent=1 // pred_check
      _
    $region11: #{linear_forward.1} parent=1 // pred_check_branch
      %24 = sbr.rel (0) target = $region13
    $region12: #{linear_forward.1} parent=1 // pred_region
      _
    $region13: #{linear_forward.1} parent=1 // pred_fallthru
      _
    // Predicated region
    $region14: #{linear_forward.1} parent=1 // pred_check
      _
    $region15: #{linear_forward.1} parent=1 // pred_check_branch
      %26 = sbr.rel (0) target = $region17
    $region16: #{linear_forward.1} parent=1 // pred_region
      %27 = dma.done [#allocation4], 1024
    $region17: #{linear_forward.1} parent=1 // pred_fallthru
      _
    %p29 = scmp.eq.s32.totalorder 0, 0
    // Predicated region
    $region18: #{linear_forward.1} parent=1 // pred_check
      %p30 = pneg %p29
    $region19: #{linear_forward.1} parent=1 // pred_check_branch
      %32 = sbr.rel (%p30) target = $region21
    $region20: #{linear_forward.1} parent=1 // pred_region
      %33 = vst [vmem:[#allocation2] sm:$0xff] 0.0
      %34 = vst [vmem:[#allocation2 + $0x8] sm:$0xff] 0.0
    $region21: #{linear_forward.1} parent=1 // pred_fallthru
      _
    %v35 = vld [vmem:[#allocation2] sm:$0xff]
    %v36 = vld [vmem:[#allocation2 + $0x8] sm:$0xff]
    %v37 = vld [vmem:[%s0] sm:$0xff]
    %v38 = vld [vmem:[%s0 + $0x8] sm:$0xff]
    %v39 = vpack.c.bf16 %v38, %v37
    %v40 = vld [vmem:[#allocation3] sm:$0xf]
    %v41 = vld [vmem:[#allocation3 + $0x4] sm:$0xf]
    %v42 = vld [vmem:[#allocation3 + $0x8] sm:$0xf]
    %v43 = vld [vmem:[#allocation3 + $0xc] sm:$0xf]
    %v44 = vld [vmem:[#allocation3 + $0x10] sm:$0xf]
    %v45 = vld [vmem:[#allocation3 + $0x14] sm:$0xf]
    %v46 = vld [vmem:[#allocation3 + $0x18] sm:$0xf]
    %v47 = vld [vmem:[#allocation3 + $0x1c] sm:$0xf]
    %v48 = vld [vmem:[#allocation3 + $0x20] sm:$0xf]
    %v49 = vld [vmem:[#allocation3 + $0x24] sm:$0xf]
    %v50 = vld [vmem:[#allocation3 + $0x28] sm:$0xf]
    %v51 = vld [vmem:[#allocation3 + $0x2c] sm:$0xf]
    %v52 = vld [vmem:[#allocation3 + $0x30] sm:$0xf]
    %v53 = vld [vmem:[#allocation3 + $0x34] sm:$0xf]
    %v54 = vld [vmem:[#allocation3 + $0x38] sm:$0xf]
    %v55 = vld [vmem:[#allocation3 + $0x3c] sm:$0xf]
    %v72 = vunpack.c.l.b16 %v40
    %v73 = vunpack.c.l.b16 %v41
    %v74 = vunpack.c.l.b16 %v42
    %v75 = vunpack.c.l.b16 %v43
    %v76 = vunpack.c.l.b16 %v44
    %v77 = vunpack.c.l.b16 %v45
    %v78 = vunpack.c.l.b16 %v46
    %v79 = vunpack.c.l.b16 %v47
    %v80 = vunpack.c.l.b16 %v48
    %v81 = vunpack.c.l.b16 %v49
    %v82 = vunpack.c.l.b16 %v50
    %v83 = vunpack.c.l.b16 %v51
    %v84 = vunpack.c.l.b16 %v52
    %v85 = vunpack.c.l.b16 %v53
    %v86 = vunpack.c.l.b16 %v54
    %v87 = vunpack.c.l.b16 %v55
    %v88 = vpack.c.b16 %v73, %v72
    %v89 = vpack.c.b16 %v75, %v74
    %v90 = vpack.c.b16 %v77, %v76
    %v91 = vpack.c.b16 %v79, %v78
    %v92 = vpack.c.b16 %v81, %v80
    %v93 = vpack.c.b16 %v83, %v82
    %v94 = vpack.c.b16 %v85, %v84
    %v95 = vpack.c.b16 %v87, %v86
    %104 = vmatprep.subr.bf16.mxu0 0
    %105 = vmatpush1.bf16.msra.mxu0 %v95
    %106 = vmatprep.subr.bf16.mxu0 0
    %107 = vmatpush1.bf16.msra.mxu0 %v94
    %108 = vmatprep.subr.bf16.mxu0 0
    %109 = vmatpush1.bf16.msra.mxu0 %v93
    %110 = vmatprep.subr.bf16.mxu0 0
    %111 = vmatpush1.bf16.msra.mxu0 %v92
    %112 = vmatprep.subr.bf16.mxu0 0
    %113 = vmatpush1.bf16.msra.mxu0 %v91
    %114 = vmatprep.subr.bf16.mxu0 0
    %115 = vmatpush1.bf16.msra.mxu0 %v90
    %116 = vmatprep.subr.bf16.mxu0 0
    %117 = vmatpush1.bf16.msra.mxu0 %v89
    %118 = vmatprep.subr.bf16.mxu0 0
    %119 = vmatpush1.bf16.msra.mxu0 %v88
    %120 = vmatprep.subr.bf16.mxu0 0
    %121 = vmatpush2.bf16.msra.mxu0 0
    %122 = vmatprep.subr.bf16.mxu0 0
    %123 = vmatpush2.bf16.msra.mxu0 0
    %124 = vmatprep.subr.bf16.mxu0 0
    %125 = vmatpush2.bf16.msra.mxu0 0
    %126 = vmatprep.subr.bf16.mxu0 0
    %127 = vmatpush2.bf16.msra.mxu0 0
    %128 = vmatprep.subr.bf16.mxu0 0
    %129 = vmatpush2.bf16.msra.mxu0 0
    %130 = vmatprep.subr.bf16.mxu0 0
    %131 = vmatpush2.bf16.msra.mxu0 0
    %132 = vmatprep.subr.bf16.mxu0 0
    %133 = vmatpush2.bf16.msra.mxu0 0
    %134 = vmatprep.subr.bf16.mxu0 0
    %135 = vmatpush2.bf16.msra.mxu0 0
    %136 = vmatprep.mubr.bf16.mxu0 0
    %137 = vmatmul.mubr.bf16.gmra.mxu0 %v39
    %v138 = vpop.f32.mrf.mxu0
    %v139 = vadd.f32 0.0, %v138
    %v140 = vpop.f32.mrf.mxu0
    %v141 = vpop.f32.mrf.mxu0
    %v142 = vadd.f32 0.0, %v141
    %v143 = vpop.f32.mrf.mxu0
    %144 = vdwg.mxu0
    %v145 = vadd.f32 %v35, %v139
    %v146 = vadd.f32 %v36, %v142
    %147 = vst [vmem:[#allocation2] sm:$0xff] %v145
    %148 = vst [vmem:[#allocation2 + $0x8] sm:$0xff] %v146
    // Predicated region
    $region22: #{linear_forward.1} parent=1 // pred_check
      %p149 = pneg %p29
    $region23: #{linear_forward.1} parent=1 // pred_check_branch
      %151 = sbr.rel (%p149) target = $region25
    $region24: #{linear_forward.1} parent=1 // pred_region
      %v152 = vld [vmem:[#allocation2] sm:$0xff]
      %v153 = vld [vmem:[#allocation2 + $0x8] sm:$0xff]
      %v154 = vld [vmem:[%s2] sm:$0x1]
      %v156 = vlaneseq
      %v157 = vshrl.u32 %v156, 7
      %v158 = vsub.s32 0, %v157
      %v159 = vrot.slane %v154, %v158
      %v161 = vadd.f32 %v152, %v159
      %v162 = vadd.f32 %v153, %v159
      %163 = vst [vmem:[%s3] sm:$0xff] %v161
      %164 = vst [vmem:[%s3 + $0x8] sm:$0xff] %v162
    $region25: #{linear_forward.1} parent=1 // pred_fallthru
      _
    // Predicated region
    $region26: #{linear_forward.1} parent=1 // pred_check
      _
    $region27: #{linear_forward.1} parent=1 // pred_check_branch
      %166 = sbr.rel (0) target = $region29
    $region28: #{linear_forward.1} parent=1 // pred_region
      _
    $region29: #{linear_forward.1} parent=1 // pred_fallthru
      _
    // Predicated region
    $region30: #{linear_forward.1} parent=1 // pred_check
      _
    $region31: #{linear_forward.1} parent=1 // pred_check_branch
      %168 = sbr.rel (0) target = $region33
    $region32: #{linear_forward.1} parent=1 // pred_region
      _
    $region33: #{linear_forward.1} parent=1 // pred_fallthru
      _
    %169 = vsyncpa [#allocation4], 1

</llo_original>
